<compile_context>
chip_gen: v6e
topology: v6e:2x2x1
jax: 0.10.0
libtpu: 0.0.40
codegen_flags: <defaults>
</compile_context>

<pallas_src>
import math

import jax
import jax.numpy as jnp
import numpy as np
from jax.experimental import pallas as pl
from jax.experimental.pallas import tpu as pltpu

# ---- static module configuration (mirrors `opt`) ----------------------------
NUM_SEMANTICS = 6                       # out_semantics (things_stuff=False)
NUM_THINGS = 2
INS_CHANNELS = 3 + 1 + NUM_THINGS       # center(1)+offset(2)+edge(1)+density(2)
FUSED_CHANNELS = NUM_SEMANTICS + INS_CHANNELS          # 12
PACKED_OUT = NUM_SEMANTICS + INS_CHANNELS + 2 * NUM_SEMANTICS   # 24
FILTER_COND = True
EPS = 1e-6


def _cond_mask_kernel(x_ref, w_ref, b_ref, cond_ref, out_ref):
    """One grid step == one block of Bt images.

    x_ref    : (Bt, C_in, HW)  activations, HW on the lane axis.
    w_ref    : (12, C_in)      fused sem+ins 1x1-conv weight (pre-scaled).
    b_ref    : (12, 1)         fused bias.
    cond_ref : (Bt, 8, 1)      rows 0:6 = filtered sem_cond * HW, rows 6:8 = ins_cond.
    out_ref  : (Bt, 24, HW)    packed [sem_seg | center | offset | edge | density |
                                        sem_mask | raw_sem_seg].
    """
    x = x_ref[...]
    bt, c_in, _ = x.shape
    w = w_ref[...]
    bias = b_ref[...]

    # Fused 1x1 convs == a single (12, C_in) @ (C_in, HW) MXU matmul per image.
    if bt == 1:
        raw = jnp.dot(w, x[0], preferred_element_type=jnp.float32)[None] + bias[None]
    else:
        wb = jnp.broadcast_to(w[None], (bt, FUSED_CHANNELS, c_in))
        raw = jnp.einsum("boc,bcn->bon", wb, x,
                         preferred_element_type=jnp.float32) + bias[None]

    raw_sem = raw[:, :NUM_SEMANTICS, :]                 # (Bt, 6, HW)
    raw_ins = raw[:, NUM_SEMANTICS:, :]                 # (Bt, 6, HW)

    cond = cond_ref[...]
    sem_scale = cond[:, :NUM_SEMANTICS, :]              # (Bt, 6, 1) == filtered sem_cond * HW
    ins_scale = cond[:, NUM_SEMANTICS:, :]              # (Bt, 2, 1)

    # cond_sem_activation (weakly=False): spatial softmax per channel.
    # Lane reduce + one reciprocal per row; cond*HW is folded into the same factor.
    m = jnp.max(raw_sem, axis=-1, keepdims=True)
    e = jnp.exp(raw_sem - m)
    inv_spatial = 1.0 / jnp.sum(e, axis=-1, keepdims=True)         # (Bt, 6, 1)
    sem_mask = e * (sem_scale * inv_spatial)

    # Channel normalisation: 6-row sum via unrolled VPU adds, one reciprocal per
    # spatial column, broadcast multiplies (no full-vector divides).
    num = sem_mask + EPS
    chan_sum = num[:, 0:1, :]
    for c in range(1, NUM_SEMANTICS):
        chan_sum = chan_sum + num[:, c:c + 1, :]
    sem_seg = num * (1.0 / chan_sum)

    # cond_ins_activation (split_ins order: center, offset(2), edge, density).
    ins_center = jax.nn.sigmoid(raw_ins[:, 0:1, :])
    ins_offset = jnp.tanh(raw_ins[:, 1:3, :])
    ins_edge = jax.nn.sigmoid(raw_ins[:, 3:4, :])

    dens = raw_ins[:, 4:4 + NUM_THINGS, :]
    md = jnp.max(dens, axis=-1, keepdims=True)
    ed = jnp.exp(dens - md)
    inv_d = 1.0 / jnp.sum(ed, axis=-1, keepdims=True)               # (Bt, 2, 1)
    ins_density = ed * (ins_scale * inv_d)

    # Packed, lane-dense output slab (single HBM writeback per grid step).
    out_ref[:, 0:6, :] = sem_seg
    out_ref[:, 6:7, :] = ins_center
    out_ref[:, 7:9, :] = ins_offset
    out_ref[:, 9:10, :] = ins_edge
    out_ref[:, 10:12, :] = ins_density
    out_ref[:, 12:18, :] = sem_mask
    out_ref[:, 18:24, :] = raw_sem


def _pick_block_b(B, C_in, HW):
    """Batch-block size: fill a VMEM budget but keep >=2 grid steps (v7x megacore)."""
    per_image_bytes = (C_in + PACKED_OUT) * HW * 4       # f32 in + packed out per image
    budget_bytes = 4 * 1024 * 1024                       # per pipelined buffer; safe on v7x 64 MiB VMEM
    bt = max(1, min(B, budget_bytes // max(per_image_bytes, 1)))
    while bt > 1 and B // bt < 2:                        # keep both v7x TensorCores fed
        bt -= 1
    while B % bt != 0:                                   # block must divide B (no ragged tail)
        bt -= 1
    return bt


def cond_mask_forward(x_nchw, params, cond):
    """x_nchw: (B, C_in, H, W) float32.  Returns the CondMask output dict (NCHW)."""
    B, C_in, H, W = x_nchw.shape
    HW = H * W
    x = x_nchw.reshape(B, C_in, HW).astype(jnp.float32)

    # EqualizedConv2d(gain=1, k=1): effective weight = weight / sqrt(fan_in).
    scale = 1.0 / math.sqrt(C_in)
    w = jnp.concatenate([params["sem_w"], params["ins_w"]], axis=0).astype(jnp.float32) * scale
    b = jnp.concatenate([params["sem_b"], params["ins_b"]], axis=0) \
        .reshape(FUSED_CHANNELS, 1).astype(jnp.float32)
    # TODO(synk): optionally cast x / w to bf16 for the MXU (keep post-matmul math in f32);
    # kept f32 here to preserve 2e-5 parity with the reference.

    # AssistedActivation.filter_sem_cond: 6 scalars per image -> hoisted out of the kernel;
    # the * H * W constant of sem_mask is folded in here as well.
    sem_cond = cond["sem_cond"].astype(jnp.float32)                  # (B, 6)
    if FILTER_COND:
        sem_cond = jnp.where(sem_cond < 1.0 / HW, 0.0, sem_cond)
        sem_cond = sem_cond / jnp.sum(sem_cond, axis=1, keepdims=True)
        # NOTE: matches the PyTorch reference exactly (including NaN if a row fully filters out).
    cond_packed = jnp.concatenate(
        [sem_cond * float(HW), cond["ins_cond"].astype(jnp.float32)], axis=1
    ).reshape(B, NUM_SEMANTICS + NUM_THINGS, 1)

    Bt = _pick_block_b(B, C_in, HW)
    grid = (B // Bt,)

    x_block_bytes = Bt * C_in * HW * 4
    out_block_bytes = Bt * PACKED_OUT * HW * 4
    vmem_limit = int(min(48 << 20,
                         max(8 << 20, 3 * (x_block_bytes + out_block_bytes) + (2 << 20))))

    packed = pl.pallas_call(
        _cond_mask_kernel,
        out_shape=jax.ShapeDtypeStruct((B, PACKED_OUT, HW), jnp.float32),
        grid=grid,
        in_specs=[
            pl.BlockSpec((Bt, C_in, HW), lambda i: (i, 0, 0)),                     # x
            pl.BlockSpec((FUSED_CHANNELS, C_in), lambda i: (0, 0)),                # fused weight
            pl.BlockSpec((FUSED_CHANNELS, 1), lambda i: (0, 0)),                   # fused bias
            pl.BlockSpec((Bt, NUM_SEMANTICS + NUM_THINGS, 1), lambda i: (i, 0, 0)),  # packed cond
        ],
        out_specs=pl.BlockSpec((Bt, PACKED_OUT, HW), lambda i: (i, 0, 0)),
        compiler_params=pltpu.CompilerParams(
            dimension_semantics=("parallel",),
            vmem_limit_bytes=vmem_limit,
        ),
    )(x, w, b, cond_packed)

    def chw(a):
        return a.reshape(B, -1, H, W)

    return {
        "sem_seg": chw(packed[:, 0:6]),
        "ins_center": chw(packed[:, 6:7]),
        "ins_offset": chw(packed[:, 7:9]),
        "ins_edge": chw(packed[:, 9:10]),
        "ins_density": chw(packed[:, 10:12]),
        "sem_mask": chw(packed[:, 12:18]),
        "raw_sem_seg": chw(packed[:, 18:24]),
    }


def reference_forward(x, params, cond):
    """Pure-JAX reference mirroring the PyTorch forward (NCHW)."""
    B, C_in, H, W = x.shape
    scale = 1.0 / np.sqrt(C_in)
    raw_sem = jnp.einsum("oc,bchw->bohw", params["sem_w"] * scale, x) \
        + params["sem_b"][None, :, None, None]
    raw_ins = jnp.einsum("oc,bchw->bohw", params["ins_w"] * scale, x) \
        + params["ins_b"][None, :, None, None]

    sem_cond = cond["sem_cond"]
    sem_cond = jnp.where(sem_cond < 1.0 / (H * W), 0.0, sem_cond)
    sem_cond = sem_cond / jnp.sum(sem_cond, axis=1, keepdims=True)

    sm = jax.nn.softmax(raw_sem.reshape(B, NUM_SEMANTICS, -1), axis=2).reshape(raw_sem.shape)
    sem_mask = sm * sem_cond[:, :, None, None] * H * W
    sem_seg = (sem_mask + EPS) / jnp.sum(sem_mask + EPS, axis=1, keepdims=True)

    ins_center = jax.nn.sigmoid(raw_ins[:, 0:1])
    ins_offset = jnp.tanh(raw_ins[:, 1:3])
    ins_edge = jax.nn.sigmoid(raw_ins[:, 3:4])
    dens = jax.nn.softmax(raw_ins[:, 4:4 + NUM_THINGS].reshape(B, NUM_THINGS, -1),
                          axis=2).reshape(B, NUM_THINGS, H, W)
    ins_density = dens * cond["ins_cond"][:, :, None, None]
    return {"sem_seg": sem_seg, "ins_center": ins_center, "ins_offset": ins_offset,
            "ins_edge": ins_edge, "ins_density": ins_density,
            "sem_mask": sem_mask, "raw_sem_seg": raw_sem}


if __name__ == "__main__":
    B, C_IN, H, W = 2, 32, 16, 16
    key = jax.random.PRNGKey(0)
    kx, kw1, kb1, kw2, kb2, kc1, kc2 = jax.random.split(key, 7)

    x = jax.random.normal(kx, (B, C_IN, H, W), dtype=jnp.float32)
    params = {
        "sem_w": jax.random.normal(kw1, (NUM_SEMANTICS, C_IN), dtype=jnp.float32),
        "sem_b": 0.1 * jax.random.normal(kb1, (NUM_SEMANTICS,), dtype=jnp.float32),
        "ins_w": jax.random.normal(kw2, (INS_CHANNELS, C_IN), dtype=jnp.float32),
        "ins_b": 0.1 * jax.random.normal(kb2, (INS_CHANNELS,), dtype=jnp.float32),
    }
    cond = {
        "sem_cond": jax.nn.softmax(jax.random.normal(kc1, (B, NUM_SEMANTICS)), axis=1),
        "ins_cond": jax.nn.sigmoid(jax.random.normal(kc2, (B, NUM_THINGS))),
    }

    out = cond_mask_forward(x, params, cond)
    jax.block_until_ready(out)

    ref = reference_forward(x, params, cond)
    for name in out:
        np.testing.assert_allclose(np.asarray(out[name]), np.asarray(ref[name]),
                                   rtol=2e-5, atol=2e-5)

    # TODO(synk): the non-assisted / things_stuff / weakly branches of the PyTorch
    # module are config-dependent dead code for this instantiation and are not lowered.
    print("KERNEL_OK")
</pallas_src>

<mosaic_0001>
module attributes {stable_mosaic.version = 11 : i64} {
  func.func @_cond_mask_kernel(%arg0: i32, %arg1: memref<1x32x256xf32, #tpu.memory_space<vmem>>, %arg2: memref<12x32xf32, #tpu.memory_space<vmem>>, %arg3: memref<12x1xf32, #tpu.memory_space<vmem>>, %arg4: memref<1x8x1xf32, #tpu.memory_space<vmem>>, %arg5: memref<1x24x256xf32, #tpu.memory_space<vmem>>) attributes {dimension_semantics = [#tpu.dimension_semantics<parallel>], iteration_bounds = array<i64: 2>, scalar_prefetch = 0 : i64, scratch_operands = 0 : i64, tpu.core_type = #tpu.core_type<tc>, window_params = [{transform_indices = @transform_0, window_bounds = array<i64: 1, 32, 256>}, {pipeline_mode = #tpu.pipeline_mode<synchronous>, transform_indices = @transform_1, window_bounds = array<i64: 12, 32>}, {pipeline_mode = #tpu.pipeline_mode<synchronous>, transform_indices = @transform_2, window_bounds = array<i64: 12, 1>}, {transform_indices = @transform_3, window_bounds = array<i64: 1, 8, 1>}, {transform_indices = @transform_4, window_bounds = array<i64: 1, 24, 256>}]} {
    %c0 = arith.constant 0 : index
    %c0_0 = arith.constant 0 : index
    %c0_1 = arith.constant 0 : index
    %0 = vector.load %arg1[%c0, %c0_0, %c0_1] : memref<1x32x256xf32, #tpu.memory_space<vmem>>, vector<1x32x256xf32>
    %c0_2 = arith.constant 0 : index
    %c0_3 = arith.constant 0 : index
    %1 = vector.load %arg2[%c0_2, %c0_3] : memref<12x32xf32, #tpu.memory_space<vmem>>, vector<12x32xf32>
    %c0_4 = arith.constant 0 : index
    %c0_5 = arith.constant 0 : index
    %2 = vector.load %arg3[%c0_4, %c0_5] : memref<12x1xf32, #tpu.memory_space<vmem>>, vector<12x1xf32>
    %3 = vector.shape_cast %0 : vector<1x32x256xf32> to vector<32x256xf32>
    %cst = arith.constant dense<0.000000e+00> : vector<12x256xf32>
    %4 = tpu.matmul %1, %3, %cst {dimension_numbers = #tpu.dot_dimension_numbers<[1], [0], [0], [1], [0, 0, 1, 1], [], []>} : vector<12x32xf32>, vector<32x256xf32>, vector<12x256xf32> -> vector<12x256xf32>
    %5 = vector.shape_cast %4 : vector<12x256xf32> to vector<1x12x256xf32>
    %6 = vector.shape_cast %2 : vector<12x1xf32> to vector<1x12x1xf32>
    %7 = vector.broadcast %6 : vector<1x12x1xf32> to vector<1x12x256xf32>
    %8 = arith.addf %5, %7 : vector<1x12x256xf32>
    %9 = vector.extract_strided_slice %8 {offsets = [0, 0, 0], sizes = [1, 6, 256], strides = [1, 1, 1]} : vector<1x12x256xf32> to vector<1x6x256xf32>
    %10 = vector.extract_strided_slice %8 {offsets = [0, 6, 0], sizes = [1, 6, 256], strides = [1, 1, 1]} : vector<1x12x256xf32> to vector<1x6x256xf32>
    %c0_6 = arith.constant 0 : index
    %c0_7 = arith.constant 0 : index
    %c0_8 = arith.constant 0 : index
    %11 = vector.load %arg4[%c0_6, %c0_7, %c0_8] : memref<1x8x1xf32, #tpu.memory_space<vmem>>, vector<1x8x1xf32>
    %12 = vector.extract_strided_slice %11 {offsets = [0, 0, 0], sizes = [1, 6, 1], strides = [1, 1, 1]} : vector<1x8x1xf32> to vector<1x6x1xf32>
    %13 = vector.extract_strided_slice %11 {offsets = [0, 6, 0], sizes = [1, 2, 1], strides = [1, 1, 1]} : vector<1x8x1xf32> to vector<1x2x1xf32>
    %cst_9 = arith.constant dense<0xFF800000> : vector<1x6xf32>
    %14 = vector.multi_reduction <maximumf>, %9, %cst_9 [2] : vector<1x6x256xf32> to vector<1x6xf32>
    %15 = vector.shape_cast %14 : vector<1x6xf32> to vector<1x6x1xf32>
    %16 = vector.broadcast %15 : vector<1x6x1xf32> to vector<1x6x256xf32>
    %17 = arith.subf %9, %16 : vector<1x6x256xf32>
    %18 = math.exp %17 : vector<1x6x256xf32>
    %cst_10 = arith.constant dense<0.000000e+00> : vector<1x6xf32>
    %19 = vector.multi_reduction <add>, %18, %cst_10 [2] : vector<1x6x256xf32> to vector<1x6xf32>
    %20 = vector.shape_cast %19 : vector<1x6xf32> to vector<1x6x1xf32>
    %cst_11 = arith.constant 1.000000e+00 : f32
    %21 = vector.broadcast %cst_11 : f32 to vector<1x6x1xf32>
    %22 = arith.divf %21, %20 : vector<1x6x1xf32>
    %23 = arith.mulf %12, %22 : vector<1x6x1xf32>
    %24 = vector.broadcast %23 : vector<1x6x1xf32> to vector<1x6x256xf32>
    %25 = arith.mulf %18, %24 : vector<1x6x256xf32>
    %cst_12 = arith.constant 9.99999997E-7 : f32
    %26 = vector.broadcast %cst_12 : f32 to vector<1x6x256xf32>
    %27 = arith.addf %25, %26 : vector<1x6x256xf32>
    %28 = vector.extract_strided_slice %27 {offsets = [0, 0, 0], sizes = [1, 1, 256], strides = [1, 1, 1]} : vector<1x6x256xf32> to vector<1x1x256xf32>
    %29 = vector.extract_strided_slice %27 {offsets = [0, 1, 0], sizes = [1, 1, 256], strides = [1, 1, 1]} : vector<1x6x256xf32> to vector<1x1x256xf32>
    %30 = arith.addf %28, %29 : vector<1x1x256xf32>
    %31 = vector.extract_strided_slice %27 {offsets = [0, 2, 0], sizes = [1, 1, 256], strides = [1, 1, 1]} : vector<1x6x256xf32> to vector<1x1x256xf32>
    %32 = arith.addf %30, %31 : vector<1x1x256xf32>
    %33 = vector.extract_strided_slice %27 {offsets = [0, 3, 0], sizes = [1, 1, 256], strides = [1, 1, 1]} : vector<1x6x256xf32> to vector<1x1x256xf32>
    %34 = arith.addf %32, %33 : vector<1x1x256xf32>
    %35 = vector.extract_strided_slice %27 {offsets = [0, 4, 0], sizes = [1, 1, 256], strides = [1, 1, 1]} : vector<1x6x256xf32> to vector<1x1x256xf32>
    %36 = arith.addf %34, %35 : vector<1x1x256xf32>
    %37 = vector.extract_strided_slice %27 {offsets = [0, 5, 0], sizes = [1, 1, 256], strides = [1, 1, 1]} : vector<1x6x256xf32> to vector<1x1x256xf32>
    %38 = arith.addf %36, %37 : vector<1x1x256xf32>
    %cst_13 = arith.constant 1.000000e+00 : f32
    %39 = vector.broadcast %cst_13 : f32 to vector<1x1x256xf32>
    %40 = arith.divf %39, %38 : vector<1x1x256xf32>
    %41 = vector.broadcast %40 : vector<1x1x256xf32> to vector<1x6x256xf32>
    %42 = arith.mulf %27, %41 : vector<1x6x256xf32>
    %43 = vector.extract_strided_slice %10 {offsets = [0, 0, 0], sizes = [1, 1, 256], strides = [1, 1, 1]} : vector<1x6x256xf32> to vector<1x1x256xf32>
    %44 = arith.negf %43 : vector<1x1x256xf32>
    %45 = math.exp %44 : vector<1x1x256xf32>
    %cst_14 = arith.constant 1.000000e+00 : f32
    %46 = vector.broadcast %cst_14 : f32 to vector<1x1x256xf32>
    %47 = arith.addf %46, %45 : vector<1x1x256xf32>
    %48 = arith.divf %46, %47 : vector<1x1x256xf32>
    %49 = vector.extract_strided_slice %10 {offsets = [0, 1, 0], sizes = [1, 2, 256], strides = [1, 1, 1]} : vector<1x6x256xf32> to vector<1x2x256xf32>
    %50 = math.tanh %49 : vector<1x2x256xf32>
    %51 = vector.extract_strided_slice %10 {offsets = [0, 3, 0], sizes = [1, 1, 256], strides = [1, 1, 1]} : vector<1x6x256xf32> to vector<1x1x256xf32>
    %52 = arith.negf %51 : vector<1x1x256xf32>
    %53 = math.exp %52 : vector<1x1x256xf32>
    %cst_15 = arith.constant 1.000000e+00 : f32
    %54 = vector.broadcast %cst_15 : f32 to vector<1x1x256xf32>
    %55 = arith.addf %54, %53 : vector<1x1x256xf32>
    %56 = arith.divf %54, %55 : vector<1x1x256xf32>
    %57 = vector.extract_strided_slice %10 {offsets = [0, 4, 0], sizes = [1, 2, 256], strides = [1, 1, 1]} : vector<1x6x256xf32> to vector<1x2x256xf32>
    %cst_16 = arith.constant dense<0xFF800000> : vector<1x2xf32>
    %58 = vector.multi_reduction <maximumf>, %57, %cst_16 [2] : vector<1x2x256xf32> to vector<1x2xf32>
    %59 = vector.shape_cast %58 : vector<1x2xf32> to vector<1x2x1xf32>
    %60 = vector.broadcast %59 : vector<1x2x1xf32> to vector<1x2x256xf32>
    %61 = arith.subf %57, %60 : vector<1x2x256xf32>
    %62 = math.exp %61 : vector<1x2x256xf32>
    %cst_17 = arith.constant dense<0.000000e+00> : vector<1x2xf32>
    %63 = vector.multi_reduction <add>, %62, %cst_17 [2] : vector<1x2x256xf32> to vector<1x2xf32>
    %64 = vector.shape_cast %63 : vector<1x2xf32> to vector<1x2x1xf32>
    %cst_18 = arith.constant 1.000000e+00 : f32
    %65 = vector.broadcast %cst_18 : f32 to vector<1x2x1xf32>
    %66 = arith.divf %65, %64 : vector<1x2x1xf32>
    %67 = arith.mulf %13, %66 : vector<1x2x1xf32>
    %68 = vector.broadcast %67 : vector<1x2x1xf32> to vector<1x2x256xf32>
    %69 = arith.mulf %62, %68 : vector<1x2x256xf32>
    %c0_19 = arith.constant 0 : index
    %c0_20 = arith.constant 0 : index
    %c0_21 = arith.constant 0 : index
    %70 = vector.load %arg5[%c0_19, %c0_20, %c0_21] : memref<1x24x256xf32, #tpu.memory_space<vmem>>, vector<1x6x256xf32>
    tpu.vector_store %arg5[%c0_19, %c0_20, %c0_21], %42 {strides = array<i32>} : memref<1x24x256xf32, #tpu.memory_space<vmem>>, vector<1x6x256xf32>,
    %c0_22 = arith.constant 0 : index
    %c6 = arith.constant 6 : index
    %c0_23 = arith.constant 0 : index
    %71 = vector.load %arg5[%c0_22, %c6, %c0_23] : memref<1x24x256xf32, #tpu.memory_space<vmem>>, vector<1x1x256xf32>
    tpu.vector_store %arg5[%c0_22, %c6, %c0_23], %48 {strides = array<i32>} : memref<1x24x256xf32, #tpu.memory_space<vmem>>, vector<1x1x256xf32>,
    %c0_24 = arith.constant 0 : index
    %c7 = arith.constant 7 : index
    %c0_25 = arith.constant 0 : index
    %72 = vector.load %arg5[%c0_24, %c7, %c0_25] : memref<1x24x256xf32, #tpu.memory_space<vmem>>, vector<1x2x256xf32>
    tpu.vector_store %arg5[%c0_24, %c7, %c0_25], %50 {strides = array<i32>} : memref<1x24x256xf32, #tpu.memory_space<vmem>>, vector<1x2x256xf32>,
    %c0_26 = arith.constant 0 : index
    %c9 = arith.constant 9 : index
    %c0_27 = arith.constant 0 : index
    %73 = vector.load %arg5[%c0_26, %c9, %c0_27] : memref<1x24x256xf32, #tpu.memory_space<vmem>>, vector<1x1x256xf32>
    tpu.vector_store %arg5[%c0_26, %c9, %c0_27], %56 {strides = array<i32>} : memref<1x24x256xf32, #tpu.memory_space<vmem>>, vector<1x1x256xf32>,
    %c0_28 = arith.constant 0 : index
    %c10 = arith.constant 10 : index
    %c0_29 = arith.constant 0 : index
    %74 = vector.load %arg5[%c0_28, %c10, %c0_29] : memref<1x24x256xf32, #tpu.memory_space<vmem>>, vector<1x2x256xf32>
    tpu.vector_store %arg5[%c0_28, %c10, %c0_29], %69 {strides = array<i32>} : memref<1x24x256xf32, #tpu.memory_space<vmem>>, vector<1x2x256xf32>,
    %c0_30 = arith.constant 0 : index
    %c12 = arith.constant 12 : index
    %c0_31 = arith.constant 0 : index
    %75 = vector.load %arg5[%c0_30, %c12, %c0_31] : memref<1x24x256xf32, #tpu.memory_space<vmem>>, vector<1x6x256xf32>
    tpu.vector_store %arg5[%c0_30, %c12, %c0_31], %25 {strides = array<i32>} : memref<1x24x256xf32, #tpu.memory_space<vmem>>, vector<1x6x256xf32>,
    %c0_32 = arith.constant 0 : index
    %c18 = arith.constant 18 : index
    %c0_33 = arith.constant 0 : index
    %76 = vector.load %arg5[%c0_32, %c18, %c0_33] : memref<1x24x256xf32, #tpu.memory_space<vmem>>, vector<1x6x256xf32>
    tpu.vector_store %arg5[%c0_32, %c18, %c0_33], %9 {strides = array<i32>} : memref<1x24x256xf32, #tpu.memory_space<vmem>>, vector<1x6x256xf32>,
    return
  }
  func.func @transform_0(%arg0: i32) -> (i32, i32, i32) {
    %c0_i32 = arith.constant 0 : i32
    %c0_i32_0 = arith.constant 0 : i32
    %c0_i32_1 = arith.constant 0 : i32
    return %arg0, %c0_i32, %c0_i32_0 : i32, i32, i32
  }
  func.func @transform_1(%arg0: i32) -> (i32, i32) {
    %c0_i32 = arith.constant 0 : i32
    %c0_i32_0 = arith.constant 0 : i32
    %c0_i32_1 = arith.constant 0 : i32
    return %c0_i32, %c0_i32_0 : i32, i32
  }
  func.func @transform_2(%arg0: i32) -> (i32, i32) {
    %c0_i32 = arith.constant 0 : i32
    %c0_i32_0 = arith.constant 0 : i32
    %c0_i32_1 = arith.constant 0 : i32
    return %c0_i32, %c0_i32_0 : i32, i32
  }
  func.func @transform_3(%arg0: i32) -> (i32, i32, i32) {
    %c0_i32 = arith.constant 0 : i32
    %c0_i32_0 = arith.constant 0 : i32
    %c0_i32_1 = arith.constant 0 : i32
    return %arg0, %c0_i32, %c0_i32_0 : i32, i32, i32
  }
  func.func @transform_4(%arg0: i32) -> (i32, i32, i32) {
    %c0_i32 = arith.constant 0 : i32
    %c0_i32_0 = arith.constant 0 : i32
    %c0_i32_1 = arith.constant 0 : i32
    return %arg0, %c0_i32, %c0_i32_0 : i32, i32, i32
  }
}

</mosaic_0001>

<llo_original>
// kernel: tpu_custom_call.1
$region0: #{tpu_custom_call.1}
  #allocation0 [shape = 'u32[]', space=smem, size = 0x4, offset = 0x4, fixed_abs, tag = 'smem constant byte address 0x4 - core index']
  #allocation1 [shape = 'u32[144,128]{1,0:T(1,128)}', space=vmem, size = 0x12000, scoped, tag = 'internal scratch']
  %s0 = inlined_call_operand.hbm [shape: f32[2,32,256], index: 0, kind: input, shape index: {}]
  %s1 = inlined_call_operand.vmem [shape: f32[12,32], index: 1, kind: input, shape index: {}]
  %s2 = inlined_call_operand.vmem [shape: f32[12,1], index: 2, kind: input, shape index: {}]
  %s3 = inlined_call_operand.vmem [shape: f32[2,8,1], index: 3, kind: input, shape index: {}]
  %s4 = inlined_call_operand.hbm [shape: f32[2,24,256], index: 4, kind: output, shape index: {}]
  %s5 = sld [smem:[#allocation0]]
  $region53: #{tpu_custom_call.1} parent=0
    _
  %s7 = ssub.s32 1, %s5
  %s8 = scalar_select 0, %s7, %s5
  $region1: #{tpu_custom_call.1} parent=0
    #allocation2 [shape = 'u8[65536]{0}', space=vmem, size = 0x10000, scoped, tag = 'input window, operand 0']
    #allocation3 [shape = 's32[2]{0}', space=sflag, size = 0x8, scoped, tag = 'scoped memory for tpu_custom_call.1']
    #allocation4 [shape = 's32[2]{0}', space=sflag, size = 0x8, scoped, tag = 'scoped memory for tpu_custom_call.1']
    #allocation5 [shape = 'u8[49152]{0}', space=vmem, size = 0xc000, scoped, tag = 'output window, operand 0']
    %9 = vsyncpa [#allocation3], 0
    %s10 = scalar_lea.sflag [#allocation3], 1
    %11 = vsyncpa %s10, 0
    %12 = vsyncpa [#allocation4], 0
    %s13 = scalar_lea.sflag [#allocation4], 1
    %14 = vsyncpa %s13, 0
    loop: start=0, step=1, limit=4
    $region2: #{tpu_custom_call.1} parent=1 // loop_pre_header
      _
    $region3: #{tpu_custom_call.1} parent=1 // loop_header
      %s16 = sphi 0, %s20
      %p17 = scmp.ge.s32.totalorder %s16, 4
      %s26 = sphi 0, %s28
      %s29 = sphi 0, %s26
      %s30 = sphi 0, %s29
      %s46 = sphi 0, %s30
      %s50 = sphi 0, %s50
      %s52 = sphi 0, %s50
      %s53 = sphi 0, %s52
      %s67 = sphi 0, %s53
      %s71 = sphi 0, %s71
      %s73 = sphi 0, %s71
      %s74 = sphi 0, %s73
      %s88 = sphi 0, %s74
      %s94 = sphi 0, %s96
      %s97 = sphi 0, %s94
      %s98 = sphi 0, %s97
      %s114 = sphi 0, %s98
      %s120 = sphi 0, %s122
      %s123 = sphi 0, %s120
      %s124 = sphi 0, %s123
      %s140 = sphi 0, %s124
    $region4: #{tpu_custom_call.1} parent=1 // loop_header_branch
      %19 = sbr.rel (%p17) target = $region8
    $region5: #{tpu_custom_call.1} parent=1 // loop_body
      %s21 = ssub.s32 %s16, 1
      %s22 = ssub.s32 %s16, 2
      %s23 = sadd.s32 %s16, 1
      %s24 = ssub.s32 %s16, %s23
      %p25 = scmp.eq.s32.totalorder %s24, 0
      %s27 = sadd.s32 %s26, 1
      %s28 = scalar_select %p25, %s26, %s27
      %p31 = pneg %p25
      %p32 = scmp.eq.s32.totalorder %s16, 1
      %p33 = por %p31, %p32
      %p34 = scmp.ne.s32.totalorder %s26, %s29
      %p35 = scmp.eq.s32.totalorder %s16, 0
      %p36 = por %p34, %p35
      %p37 = scmp.ne.s32.totalorder %s26, %s29
      %p38 = scmp.eq.s32.totalorder %s21, 1
      %p39 = por %p37, %p38
      %p40 = scmp.ne.s32.totalorder %s29, %s30
      %p41 = scmp.eq.s32.totalorder %s21, 0
      %p42 = por %p40, %p41
      %p43 = scmp.ne.s32.totalorder %s29, %s30
      %p44 = scmp.eq.s32.totalorder %s22, 1
      %p45 = por %p43, %p44
      %p47 = scmp.ne.s32.totalorder %s30, %s46
      %p48 = scmp.eq.s32.totalorder %s22, 0
      %p49 = por %p47, %p48
      %s51 = sadd.s32 %s50, 1
      %p54 = scmp.eq.s32.totalorder %s16, 1
      %p55 = scmp.ne.s32.totalorder %s50, %s52
      %p56 = scmp.eq.s32.totalorder %s16, 0
      %p57 = por %p55, %p56
      %p58 = scmp.ne.s32.totalorder %s50, %s52
      %p59 = scmp.eq.s32.totalorder %s21, 1
      %p60 = por %p58, %p59
      %p61 = scmp.ne.s32.totalorder %s52, %s53
      %p62 = scmp.eq.s32.totalorder %s21, 0
      %p63 = por %p61, %p62
      %p64 = scmp.ne.s32.totalorder %s52, %s53
      %p65 = scmp.eq.s32.totalorder %s22, 1
      %p66 = por %p64, %p65
      %p68 = scmp.ne.s32.totalorder %s53, %s67
      %p69 = scmp.eq.s32.totalorder %s22, 0
      %p70 = por %p68, %p69
      %s72 = sadd.s32 %s71, 1
      %p75 = scmp.eq.s32.totalorder %s16, 1
      %p76 = scmp.ne.s32.totalorder %s71, %s73
      %p77 = scmp.eq.s32.totalorder %s16, 0
      %p78 = por %p76, %p77
      %p79 = scmp.ne.s32.totalorder %s71, %s73
      %p80 = scmp.eq.s32.totalorder %s21, 1
      %p81 = por %p79, %p80
      %p82 = scmp.ne.s32.totalorder %s73, %s74
      %p83 = scmp.eq.s32.totalorder %s21, 0
      %p84 = por %p82, %p83
      %p85 = scmp.ne.s32.totalorder %s73, %s74
      %p86 = scmp.eq.s32.totalorder %s22, 1
      %p87 = por %p85, %p86
      %p89 = scmp.ne.s32.totalorder %s74, %s88
      %p90 = scmp.eq.s32.totalorder %s22, 0
      %p91 = por %p89, %p90
      %s92 = ssub.s32 %s16, %s23
      %p93 = scmp.eq.s32.totalorder %s92, 0
      %s95 = sadd.s32 %s94, 1
      %s96 = scalar_select %p93, %s94, %s95
      %p99 = pneg %p93
      %p100 = scmp.eq.s32.totalorder %s16, 1
      %p101 = por %p99, %p100
      %p102 = scmp.ne.s32.totalorder %s94, %s97
      %p103 = scmp.eq.s32.totalorder %s16, 0
      %p104 = por %p102, %p103
      %p105 = scmp.ne.s32.totalorder %s94, %s97
      %p106 = scmp.eq.s32.totalorder %s21, 1
      %p107 = por %p105, %p106
      %p108 = scmp.ne.s32.totalorder %s97, %s98
      %p109 = scmp.eq.s32.totalorder %s21, 0
      %p110 = por %p108, %p109
      %p111 = scmp.ne.s32.totalorder %s97, %s98
      %p112 = scmp.eq.s32.totalorder %s22, 1
      %p113 = por %p111, %p112
      %p115 = scmp.ne.s32.totalorder %s98, %s114
      %p116 = scmp.eq.s32.totalorder %s22, 0
      %p117 = por %p115, %p116
      %s118 = ssub.s32 %s16, %s23
      %p119 = scmp.eq.s32.totalorder %s118, 0
      %s121 = sadd.s32 %s120, 1
      %s122 = scalar_select %p119, %s120, %s121
      %p125 = pneg %p119
      %p126 = scmp.eq.s32.totalorder %s16, 1
      %p127 = por %p125, %p126
      %p128 = scmp.ne.s32.totalorder %s120, %s123
      %p129 = scmp.eq.s32.totalorder %s16, 0
      %p130 = por %p128, %p129
      %p131 = scmp.ne.s32.totalorder %s120, %s123
      %p132 = scmp.eq.s32.totalorder %s21, 1
      %p133 = por %p131, %p132
      %p134 = scmp.ne.s32.totalorder %s123, %s124
      %p135 = scmp.eq.s32.totalorder %s21, 0
      %p136 = por %p134, %p135
      %p137 = scmp.ne.s32.totalorder %s123, %s124
      %p138 = scmp.eq.s32.totalorder %s22, 1
      %p139 = por %p137, %p138
      %p141 = scmp.ne.s32.totalorder %s124, %s140
      %p142 = scmp.eq.s32.totalorder %s22, 0
      %p143 = por %p141, %p142
      %p144 = scmp.le.s32.totalorder 1, %s16
      %p145 = scmp.lt.s32.totalorder %s16, 3
      %p146 = pnand %p144, %p145
      %p147 = pneg %p146
      // Predicated region
      $region9: #{tpu_custom_call.1} parent=5 // pred_check
        _
      $region10: #{tpu_custom_call.1} parent=5 // pred_check_branch
        %149 = sbr.rel (%p146) target = $region12
      $region11: #{tpu_custom_call.1} parent=5 // pred_region
        %s150 = ssub.s32 %s16, 1
        // Predicated region
        $region13: #{tpu_custom_call.1} parent=11 // pred_check
          %p151 = pneg %p63
        $region14: #{tpu_custom_call.1} parent=11 // pred_check_branch
          %153 = sbr.rel (%p151) target = $region16
        $region15: #{tpu_custom_call.1} parent=11 // pred_region
          _
        $region16: #{tpu_custom_call.1} parent=11 // pred_fallthru
          _
        // Predicated region
        $region17: #{tpu_custom_call.1} parent=11 // pred_check
          %p154 = pneg %p84
        $region18: #{tpu_custom_call.1} parent=11 // pred_check_branch
          %156 = sbr.rel (%p154) target = $region20
        $region19: #{tpu_custom_call.1} parent=11 // pred_region
          _
        $region20: #{tpu_custom_call.1} parent=11 // pred_fallthru
          _
      $region12: #{tpu_custom_call.1} parent=5 // pred_fallthru
        _
      %p157 = scmp.lt.s32.totalorder %s16, 2
      // Predicated region
      $region21: #{tpu_custom_call.1} parent=5 // pred_check
        %p158 = pneg %p157
      $region22: #{tpu_custom_call.1} parent=5 // pred_check_branch
        %160 = sbr.rel (%p158) target = $region24
      $region23: #{tpu_custom_call.1} parent=5 // pred_region
        // Predicated region
        $region25: #{tpu_custom_call.1} parent=23 // pred_check
          %p161 = pneg %p36
        $region26: #{tpu_custom_call.1} parent=23 // pred_check_branch
          %163 = sbr.rel (%p161) target = $region28
        $region27: #{tpu_custom_call.1} parent=23 // pred_region
          %s164 = sand.u32 %s26, 1
          %s165 = scalar_lea.sflag [#allocation3], %s164
          %s166 = sand.u32 %s26, 1
          %s167 = smul.addr %s166, 64
          %s168 = scalar_lea.vmem [#allocation2], %s167
          %s170 = ssub.s32 1024, 1024
          %171 = vsyncadd %s165, %s170
          %s172 = smul.addr %s16, 8
          %s173 = smul.addr %s172, 128
          %s174 = scalar_lea.hbm %s0, %s173
          %s175 = sshll.u32 %s168, 4
          %s176 = int_to_ptr.vmem [resolvable:$true] %s175
          %181 = dma.hbm_to_vmem [thread:$0]  %s174, 1024, %s176, %s165, 256, 256, 16
        $region28: #{tpu_custom_call.1} parent=23 // pred_fallthru
          _
        // Predicated region
        $region29: #{tpu_custom_call.1} parent=23 // pred_check
          %p182 = pneg %p104
        $region30: #{tpu_custom_call.1} parent=23 // pred_check_branch
          %184 = sbr.rel (%p182) target = $region32
        $region31: #{tpu_custom_call.1} parent=23 // pred_region
          %p185 = scmp.lt.s32.totalorder %s16, 1
          %s186 = scalar_select %p185, %s16, 1
          %s187 = smul.addr %s186, 8
          %s188 = scalar_lea.vmem %s3, %s187
        $region32: #{tpu_custom_call.1} parent=23 // pred_fallthru
          _
      $region24: #{tpu_custom_call.1} parent=5 // pred_fallthru
        _
      %p189 = scmp.le.s32.totalorder 1, %s16
      %p190 = scmp.lt.s32.totalorder %s16, 3
      %p191 = pnand %p189, %p190
      %p192 = pneg %p191
      // Predicated region
      $region33: #{tpu_custom_call.1} parent=5 // pred_check
        _
      $region34: #{tpu_custom_call.1} parent=5 // pred_check_branch
        %194 = sbr.rel (%p191) target = $region36
      $region35: #{tpu_custom_call.1} parent=5 // pred_region
        %s195 = ssub.s32 %s16, 1
        %s196 = sand.u32 %s29, 1
        %s197 = scalar_lea.sflag [#allocation3], %s196
        %s198 = sand.u32 %s29, 1
        %s199 = smul.addr %s198, 64
        %s200 = scalar_lea.vmem [#allocation2], %s199
        // Predicated region
        $region37: #{tpu_custom_call.1} parent=35 // pred_check
          %p201 = pneg %p42
        $region38: #{tpu_custom_call.1} parent=35 // pred_check_branch
          %203 = sbr.rel (%p201) target = $region40
        $region39: #{tpu_custom_call.1} parent=35 // pred_region
          %204 = dma.done %s197, 1024
        $region40: #{tpu_custom_call.1} parent=35 // pred_fallthru
          _
        %s205 = sand.u32 %s29, 1
        %s206 = scalar_lea.sflag [#allocation3], %s205
        %s207 = sand.u32 %s29, 1
        %s208 = smul.addr %s207, 64
        %s209 = scalar_lea.vmem [#allocation2], %s208
        %p210 = pneg %p42
        %p211 = pneg %p39
        %p212 = pneg %p63
        %p213 = pneg %p60
        %p214 = pneg %p84
        %p215 = pneg %p81
        %p216 = scmp.lt.s32.totalorder %s21, 1
        %s217 = scalar_select %p216, %s21, 1
        %s218 = smul.addr %s217, 8
        %s219 = scalar_lea.vmem %s3, %s218
        %p220 = pneg %p110
        %p221 = pneg %p107
        %p222 = pneg %p136
        %p223 = pneg %p133
        %s224 = sand.u32 %s123, 1
        %s225 = scalar_lea.sflag [#allocation4], %s224
        %s226 = sand.u32 %s123, 1
        %s227 = smul.addr %s226, 48
        %s228 = scalar_lea.vmem [#allocation5], %s227
        %p229 = scmp.lt.s32.totalorder %s21, 1
        %s230 = scalar_select %p229, %s21, 1
        %s231 = smul.addr %s230, 8
        %s232 = scalar_lea.vmem %s3, %s231
        %v233 = vld [vmem:[%s200] sm:$0xff]
        %v234 = vld [vmem:[%s200 + $0x8] sm:$0xff]
        %v235 = vld [vmem:[%s200 + $0x10] sm:$0xff]
        %v236 = vld [vmem:[%s200 + $0x18] sm:$0xff]
        %v237 = vld [vmem:[%s200 + $0x20] sm:$0xff]
        %v238 = vld [vmem:[%s200 + $0x28] sm:$0xff]
        %v239 = vld [vmem:[%s200 + $0x30] sm:$0xff]
        %v240 = vld [vmem:[%s200 + $0x38] sm:$0xff]
        %v241 = vld [vmem:[%s1] sm:$0xff]
        %v242 = vld [vmem:[%s1 + $0x8] sm:$0xf]
        %v243 = vld [vmem:[%s2] sm:$0xff]
        %v244 = vld [vmem:[%s2 + $0x8] sm:$0xf]
        %vm245 = vcmask 261120
        %v247 = vsel %vm245, %v241, 0
        %v250 = vsel %vm245, %v242, 0
        %252 = vmatprep.subr.mxu0 0.0
        %253 = vmatpush1.msra.mxu0 0.0
        %254 = vmatprep.subr.mxu0 0.0
        %255 = vmatpush1.msra.mxu0 0.0
        %256 = vmatprep.subr.mxu0 0.0
        %257 = vmatpush1.msra.mxu0 0.0
        %258 = vmatprep.subr.mxu0 0.0
        %259 = vmatpush1.msra.mxu0 0.0
        %260 = vmatprep.subr.mxu0 0.0
        %261 = vmatpush1.msra.mxu0 0.0
        %262 = vmatprep.subr.mxu0 0.0
        %263 = vmatpush1.msra.mxu0 0.0
        %264 = vmatprep.subr.mxu0 0.0
        %265 = vmatpush1.msra.mxu0 0.0
        %266 = vmatprep.subr.mxu0 0.0
        %267 = vmatpush1.msra.mxu0 0.0
        %268 = vmatprep.subr.mxu0 0.0
        %269 = vmatpush1.msra.mxu0 0.0
        %270 = vmatprep.subr.mxu0 0.0
        %271 = vmatpush1.msra.mxu0 0.0
        %272 = vmatprep.subr.mxu0 0.0
        %273 = vmatpush1.msra.mxu0 0.0
        %274 = vmatprep.subr.mxu0 0.0
        %275 = vmatpush1.msra.mxu0 0.0
        %276 = vmatprep.subr.mxu0 %v240
        %277 = vmatpush1.msra.mxu0 %v239
        %278 = vmatprep.subr.mxu0 %v238
        %279 = vmatpush1.msra.mxu0 %v237
        %280 = vmatprep.subr.mxu0 %v236
        %281 = vmatpush1.msra.mxu0 %v235
        %282 = vmatprep.subr.mxu0 %v234
        %283 = vmatpush1.msra.mxu0 %v233
        %284 = vmatprep.subr.mxu0 0.0
        %285 = vmatpush2.msra.mxu0 0.0
        %286 = vmatprep.subr.mxu0 0.0
        %287 = vmatpush2.msra.mxu0 0.0
        %288 = vmatprep.subr.mxu0 0.0
        %289 = vmatpush2.msra.mxu0 0.0
        %290 = vmatprep.subr.mxu0 0.0
        %291 = vmatpush2.msra.mxu0 0.0
        %292 = vmatprep.subr.mxu0 0.0
        %293 = vmatpush2.msra.mxu0 0.0
        %294 = vmatprep.subr.mxu0 0.0
        %295 = vmatpush2.msra.mxu0 0.0
        %296 = vmatprep.subr.mxu0 0.0
        %297 = vmatpush2.msra.mxu0 0.0
        %298 = vmatprep.subr.mxu0 0.0
        %299 = vmatpush2.msra.mxu0 0.0
        %300 = vmatprep.subr.mxu0 0.0
        %301 = vmatpush2.msra.mxu0 0.0
        %302 = vmatprep.subr.mxu0 0.0
        %303 = vmatpush2.msra.mxu0 0.0
        %304 = vmatprep.subr.mxu0 0.0
        %305 = vmatpush2.msra.mxu0 0.0
        %306 = vmatprep.subr.mxu0 0.0
        %307 = vmatpush2.msra.mxu0 0.0
        %308 = vmatprep.subr.mxu0 0.0
        %309 = vmatpush2.msra.mxu0 0.0
        %310 = vmatprep.subr.mxu0 0.0
        %311 = vmatpush2.msra.mxu0 0.0
        %312 = vmatprep.subr.mxu0 0.0
        %313 = vmatpush2.msra.mxu0 0.0
        %314 = vmatprep.subr.mxu0 0.0
        %315 = vmatpush2.msra.mxu0 0.0
        %316 = vmatprep.mubr.f32.mxu0 0.0
        %317 = vmatmul.mubr.f32.gmra.mxu0 %v247
        %v318 = vpop.f32.mrf.mxu0
        %v319 = vadd.f32 0.0, %v318
        %v320 = vpop.f32.mrf.mxu0
        %v321 = vadd.f32 0.0, %v320
        %322 = vmatprep.mubr.f32.mxu0 0.0
        %323 = vmatmul.mubr.f32.gmra.mxu0 %v250
        %v324 = vpop.f32.mrf.mxu0
        %v325 = vadd.f32 0.0, %v324
        %v326 = vpop.f32.mrf.mxu0
        %v327 = vadd.f32 0.0, %v326
        %328 = vdwg.mxu0
        %330 = vset.pattern.permute.xlu0 0
        %331 = vperm.xlu0 %330, %v243
        %v332 = vpop.permute.xlu0 %331
        %335 = vset.pattern.permute.xlu0 0
        %336 = vperm.xlu0 %335, %v244
        %v337 = vpop.permute.xlu0 %336
        %v339 = vadd.f32 %v319, %v332
        %v340 = vadd.f32 %v321, %v332
        %v341 = vadd.f32 %v325, %v337
        %v342 = vadd.f32 %v327, %v337
        %v343 = vld [vmem:[%s232] sm:$0xff]
        %vm344 = vcmask 1045504
        %v345 = vsel %vm344, %v339, -inf
        %v346 = vsel %vm344, %v340, -inf
        %v347 = vmax.f32 %v345, %v346
        %348 = vmax.xlane.f32.xlu0 %v347
        %v349 = vpop.xlane.xlu0 %348
        %v350 = vsub.f32 %v339, %v349
        %v351 = vsub.f32 %v340, %v349
        %v352 = vmul.f32 %v350, 1.442695
        %v353 = vpow.pop %v352
        %v354 = vmul.f32 %v351, 1.442695
        %v355 = vpow.pop %v354
        %v356 = vsel %vm344, %v353, 0.0
        %v357 = vsel %vm344, %v355, 0.0
        %v358 = vadd.f32 %v356, %v357
        %359 = vadd.xlane.f32.xlu0 %v358
        %v360 = vpop.xlane.xlu0 %359
        %v361 = vrcp.pop %v360
        %v362 = vmul.f32 1.0, %v361
        %v363 = vmul.f32 %v343, %v362
        %365 = vset.pattern.permute.xlu0 0
        %366 = vperm.xlu0 %365, %v363
        %v367 = vpop.permute.xlu0 %366
        %v369 = vmul.f32 %v353, %v367
        %v370 = vmul.f32 %v355, %v367
        %v371 = vadd.f32 %v369, 1e-06
        %v372 = vadd.f32 %v370, 1e-06
        %v375 = vrot.slane %v371, 1
        %v376 = vrot.slane %v372, 1
        %v379 = vadd.f32 %v371, %v375
        %v380 = vadd.f32 %v372, %v376
        %v381 = vrot.slane %v371, 2
        %v382 = vrot.slane %v372, 2
        %v385 = vadd.f32 %v379, %v381
        %v386 = vadd.f32 %v380, %v382
        %v387 = vrot.slane %v371, 3
        %v388 = vrot.slane %v372, 3
        %v391 = vadd.f32 %v385, %v387
        %v392 = vadd.f32 %v386, %v388
        %v393 = vrot.slane %v371, 4
        %v394 = vrot.slane %v372, 4
        %v397 = vadd.f32 %v391, %v393
        %v398 = vadd.f32 %v392, %v394
        %v399 = vrot.slane %v371, 5
        %v400 = vrot.slane %v372, 5
        %v403 = vadd.f32 %v397, %v399
        %v404 = vadd.f32 %v398, %v400
        %v405 = vrcp.pop %v403
        %v406 = vmul.f32 1.0, %v405
        %v407 = vrcp.pop %v404
        %v408 = vmul.f32 1.0, %v407
        %v409 = vlaneseq
        %v410 = vshrl.u32 %v409, 7
        %v411 = vsub.s32 0, %v410
        %v412 = vrot.slane %v406, %v411
        %v413 = vlaneseq
        %v414 = vshrl.u32 %v413, 7
        %v415 = vsub.s32 0, %v414
        %v416 = vrot.slane %v408, %v415
        %v417 = vmul.f32 %v371, %v412
        %v418 = vmul.f32 %v372, %v416
        %v419 = vxor.u32 %v339, 2147483648
        %v420 = vxor.u32 %v340, 2147483648
        %v421 = vmul.f32 %v419, 1.442695
        %v422 = vpow.pop %v421
        %v423 = vmul.f32 %v420, 1.442695
        %v424 = vpow.pop %v423
        %v425 = vadd.f32 %v422, 1.0
        %v426 = vadd.f32 %v424, 1.0
        %v427 = vrcp.pop %v425
        %v428 = vmul.f32 1.0, %v427
        %v429 = vrcp.pop %v426
        %v430 = vmul.f32 1.0, %v429
        %v431 = vtanh.pop %v339
        %v432 = vtanh.pop %v340
        %v433 = vtanh.pop %v341
        %v434 = vtanh.pop %v342
        %v435 = vxor.u32 %v341, 2147483648
        %v436 = vxor.u32 %v342, 2147483648
        %v437 = vmul.f32 %v435, 1.442695
        %v438 = vpow.pop %v437
        %v439 = vmul.f32 %v436, 1.442695
        %v440 = vpow.pop %v439
        %v441 = vadd.f32 %v438, 1.0
        %v442 = vadd.f32 %v440, 1.0
        %v443 = vrcp.pop %v441
        %v444 = vmul.f32 1.0, %v443
        %v445 = vrcp.pop %v442
        %v446 = vmul.f32 1.0, %v445
        %vm447 = vcmask 1043458
        %v448 = vsel %vm447, %v341, -inf
        %v449 = vsel %vm447, %v342, -inf
        %v450 = vmax.f32 %v448, %v449
        %451 = vmax.xlane.f32.xlu0 %v450
        %v452 = vpop.xlane.xlu0 %451
        %v453 = vsub.f32 %v341, %v452
        %v454 = vsub.f32 %v342, %v452
        %v455 = vmul.f32 %v453, 1.442695
        %v456 = vpow.pop %v455
        %v457 = vmul.f32 %v454, 1.442695
        %v458 = vpow.pop %v457
        %v459 = vsel %vm447, %v456, 0.0
        %v460 = vsel %vm447, %v458, 0.0
        %v461 = vadd.f32 %v459, %v460
        %462 = vadd.xlane.f32.xlu0 %v461
        %v463 = vpop.xlane.xlu0 %462
        %v464 = vrcp.pop %v463
        %v465 = vmul.f32 1.0, %v464
        %v467 = vrot.slane %v465, 4
        %v469 = vmul.f32 %v343, %v467
        %471 = vset.pattern.permute.xlu0 0
        %472 = vperm.xlu0 %471, %v469
        %v473 = vpop.permute.xlu0 %472
        %v474 = vrot.slane %v473, 4
        %v476 = vmul.f32 %v456, %v474
        %v477 = vmul.f32 %v458, %v474
        %478 = vst [vmem:[%s228] sm:$0x3f] %v417
        %479 = vst [vmem:[%s228 + $0x8] sm:$0x3f] %v418
        %v482 = vcombine.high %v428, %v430
        %v484 = vunpack.c.l.s4 1966171168
        %v485 = vunpack.c.0.s8 %v484
        %v486 = vlaneseq
        %v487 = vshrl.u32 %v486, 7
        %v488 = vsub.s32 %v485, %v487
        %v489 = vrot.slane %v482, %v488
        %v491 = vunpack.c.l.s4 1966171168
        %v492 = vunpack.c.0.s8 %v491
        %v493 = vlaneseq
        %v494 = vshrl.u32 %v493, 7
        %v495 = vsub.s32 %v492, %v494
        %v496 = vrot.slane %v489, %v495
        %v497 = vcombine.high %v496, %v496
        %v499 = vlaneseq
        %vm500 = vcmp.ge.s32.totalorder %v499, 0
        %vm501 = vcmp.lt.s32.totalorder %v499, 256
        %vm502 = vmand %vm500, %vm501
        %s503 = scalar_lea.vmem %s228, 6 [#allocation5]
        %504 = vst.msk [vmem:[%s503] ss:$8 sm:$0x3] %vm502, %v497
        %505 = vst.msk [vmem:[%s503] ss:$8 sm:$0x0] %vm502, %v497
        %506 = vst [vmem:[%s228] sm:$0x80] %v431
        %507 = vst [vmem:[%s228 + $0x8] sm:$0x80] %v432
        %508 = vst [vmem:[%s228 + $0x10] sm:$0x1] %v433
        %509 = vst [vmem:[%s228 + $0x18] sm:$0x1] %v434
        %v512 = vcombine.low %v444, %v446
        %v514 = vunpack.c.l.s4 1966171168
        %v515 = vunpack.c.0.s8 %v514
        %v516 = vlaneseq
        %v517 = vshrl.u32 %v516, 7
        %v518 = vsub.s32 %v515, %v517
        %v519 = vrot.slane %v512, %v518
        %v520 = vcombine.high %v519, %v519
        %v522 = vunpack.c.l.s4 1966171168
        %v523 = vunpack.c.0.s8 %v522
        %v524 = vlaneseq
        %v525 = vshrl.u32 %v524, 7
        %v526 = vsub.s32 %v523, %v525
        %v527 = vrot.slane %v520, %v526
        %s529 = scalar_lea.vmem %s228, 17 [#allocation5]
        %530 = vst.msk [vmem:[%s529] ss:$8 sm:$0x3] %vm502, %v527
        %531 = vst.msk [vmem:[%s529] ss:$8 sm:$0x0] %vm502, %v527
        %532 = vst [vmem:[%s228 + $0x10] sm:$0xc] %v476
        %533 = vst [vmem:[%s228 + $0x18] sm:$0xc] %v477
        %v536 = vrot.slane %v369, 4
        %v537 = vrot.slane %v370, 4
        %540 = vst [vmem:[%s228 + $0x10] sm:$0xf0] %v536
        %541 = vst [vmem:[%s228 + $0x18] sm:$0xf0] %v537
        %542 = vst [vmem:[%s228 + $0x20] sm:$0x3] %v536
        %543 = vst [vmem:[%s228 + $0x28] sm:$0x3] %v537
        %v546 = vrot.slane %v339, 6
        %v547 = vrot.slane %v340, 6
        %550 = vst [vmem:[%s228 + $0x20] sm:$0xfc] %v546
        %551 = vst [vmem:[%s228 + $0x28] sm:$0xfc] %v547
        %s552 = sand.u32 %s123, 1
        %s553 = scalar_lea.sflag [#allocation4], %s552
        %s554 = sand.u32 %s123, 1
        %s555 = smul.addr %s554, 48
        %s556 = scalar_lea.vmem [#allocation5], %s555
        // Predicated region
        $region41: #{tpu_custom_call.1} parent=35 // pred_check
          %p557 = pneg %p133
        $region42: #{tpu_custom_call.1} parent=35 // pred_check_branch
          %559 = sbr.rel (%p557) target = $region44
        $region43: #{tpu_custom_call.1} parent=35 // pred_region
          %s561 = ssub.s32 768, 768
          %562 = vsyncadd %s553, %s561
          %s563 = smul.addr %s21, 6
          %s564 = smul.addr %s563, 128
          %s565 = scalar_lea.hbm %s4, %s564
          %s566 = sshll.u32 %s556, 4
          %s567 = int_to_ptr.vmem [resolvable:$true] %s566
          %572 = dma.vmem_to_hbm [thread:$0]  %s567, 768, %s565, %s553, 256, 256, 16
        $region44: #{tpu_custom_call.1} parent=35 // pred_fallthru
          _
      $region36: #{tpu_custom_call.1} parent=5 // pred_fallthru
        _
      %p573 = scmp.le.s32.totalorder 2, %s16
      // Predicated region
      $region45: #{tpu_custom_call.1} parent=5 // pred_check
        %p574 = pneg %p573
      $region46: #{tpu_custom_call.1} parent=5 // pred_check_branch
        %576 = sbr.rel (%p574) target = $region48
      $region47: #{tpu_custom_call.1} parent=5 // pred_region
        %s577 = ssub.s32 %s16, 2
        // Predicated region
        $region49: #{tpu_custom_call.1} parent=47 // pred_check
          %p578 = pneg %p139
        $region50: #{tpu_custom_call.1} parent=47 // pred_check_branch
          %580 = sbr.rel (%p578) target = $region52
        $region51: #{tpu_custom_call.1} parent=47 // pred_region
          %s581 = sand.u32 %s124, 1
          %s582 = scalar_lea.sflag [#allocation4], %s581
          %s583 = sand.u32 %s124, 1
          %s584 = smul.addr %s583, 48
          %s585 = scalar_lea.vmem [#allocation5], %s584
          %586 = dma.done %s582, 768
        $region52: #{tpu_custom_call.1} parent=47 // pred_fallthru
          _
      $region48: #{tpu_custom_call.1} parent=5 // pred_fallthru
        _
    $region6: #{tpu_custom_call.1} parent=1 // loop_footer
      %s20 = sadd.s32 1, %s16
    $region7: #{tpu_custom_call.1} parent=1 // loop_footer_branch
      %15 = sbr.rel target = $region3
    $region8: #{tpu_custom_call.1} parent=1 // loop_exit
      _
    %587 = vsyncpa [#allocation3], 1
    %s588 = scalar_lea.sflag [#allocation3], 1
    %589 = vsyncpa %s588, 1
    %590 = vsyncpa [#allocation4], 1
    %s591 = scalar_lea.sflag [#allocation4], 1
    %592 = vsyncpa %s591, 1

</llo_original>
